<compile_context>
chip_gen: v5e
topology: v5e:2x2
jax: 0.10.0
libtpu: 0.0.40
codegen_flags: <defaults>
</compile_context>

<pallas_src>
import jax
import jax.numpy as jnp
from jax.experimental import pallas as pl
from jax.experimental.pallas import tpu as pltpu


def _valuenet_kernel(cw_ref, cb_ref, b2_ref, x_ref, w1_ref, b1_ref, w2_ref, out_ref):
    # cw_ref : SMEM (C,)       folded (BN-scaled) 1x1 conv weights, f32
    # cb_ref : SMEM (1,)       folded conv bias, f32
    # b2_ref : SMEM (1,)       fc2 bias, f32
    # x_ref  : VMEM (TB, C*HW) batch tile (batch on sublanes, features on lanes)
    # w1_ref : VMEM (HW, FC)   fc1 weight, resident (bf16 or f32)
    # b1_ref : VMEM (1, FC)    fc1 bias, resident, f32
    # w2_ref : VMEM (1, FC)    fc2 weight row, resident, f32
    # out_ref: VMEM (TB, 1)    f32
    C = cw_ref.shape[0]
    HW = w1_ref.shape[0]

    # 1x1 conv over channels (+ folded BN): unrolled scalar FMA over lane-aligned
    # (TB, HW) slices of x (HW is a multiple of 128 -> zero-cost vreg views).
    acc = x_ref[:, 0:HW].astype(jnp.float32) * cw_ref[0]
    for c in range(1, C):
        acc = acc + x_ref[:, c * HW:(c + 1) * HW].astype(jnp.float32) * cw_ref[c]
    h0 = jnp.maximum(acc + cb_ref[0], 0.0)                        # (TB, HW) f32

    # fc1 + ReLU on the MXU.  Operand dtype follows the resident weight (bf16 default,
    # f32 in exact mode); accumulation is always f32.
    h1 = jnp.dot(h0.astype(w1_ref.dtype), w1_ref[...],
                 preferred_element_type=jnp.float32) + b1_ref[...]
    h1 = jnp.maximum(h1, 0.0)                                     # (TB, FC) f32

    # fc2 + tanh as a VPU multiply + XLU lane reduce (exact f32), then EUP tanh.
    v = jnp.sum(h1 * w2_ref[...], axis=-1, keepdims=True) + b2_ref[0]
    out_ref[...] = jnp.tanh(v)                                    # (TB, 1)


def _choose_batch_tiling(B, batch_tile):
    """Pick (TB, B_pad).  Small batches: one untiled step.  Larger batches: >=2 tiles
    (so v7x's two TensorCores both get work), each a multiple of 8 sublane rows and at
    most `batch_tile` rows."""
    if B <= 128:
        return B, B                       # TB equals the full dim -> no (8,) constraint
    tb = min(batch_tile, (B + 1) // 2)    # at least 2 grid steps
    tb = max(8, ((tb + 7) // 8) * 8)
    b_pad = ((B + tb - 1) // tb) * tb
    return tb, b_pad


def _vmem_limit(bytes_needed):
    cap = 128 << 20
    try:
        cap = int(getattr(pltpu.get_tpu_info(), "vmem_capacity_bytes", cap))
    except Exception:
        pass
    budget = (cap * 3) // 4               # leave headroom for compiler scratch/pipeline
    return int(max(min(bytes_needed, budget), 16 << 20))


def value_net_forward(x_nchw, params, *, batch_tile=2048, matmul_dtype=jnp.bfloat16):
    """Fused ValueNet forward.

    x_nchw: (B, C, H, W), any float dtype.  For HBM-bound inference, pass bf16 x from
    the caller (the kernel accumulates in f32 regardless).  Returns (B, 1) float32.
    """
    B, C, H, W = x_nchw.shape
    HW = H * W
    FC = params["fc1_b"].shape[0]  # 256

    # ---- Fold eval-mode BatchNorm into the 1x1 conv (exact, f32). ----
    eps = 1e-5  # TODO(synk): keep in sync with the source module's BatchNorm eps.
    scale = params["bn_gamma"] / jnp.sqrt(params["bn_var"] + eps)              # (1,)
    cw = (params["conv_w"].reshape(C) * scale).astype(jnp.float32)             # (C,)
    cb = ((params["conv_b"] - params["bn_mean"]) * scale
          + params["bn_beta"]).astype(jnp.float32)                             # (1,)

    # ---- Free reshape only (no transpose, no extra HBM pass). ----
    x2d = x_nchw.reshape(B, C * HW)                                            # (B, C*HW)
    w1 = params["fc1_w"].astype(matmul_dtype)                                  # (HW, FC)
    b1 = params["fc1_b"].reshape(1, FC).astype(jnp.float32)                    # (1, FC)
    w2 = params["fc2_w"].reshape(FC, 1).T.astype(jnp.float32)                  # (1, FC)
    b2 = params["fc2_b"].reshape(1).astype(jnp.float32)                        # (1,)

    # ---- Batch tiling (grid over B, batch on the sublane axis). ----
    TB, B_pad = _choose_batch_tiling(B, batch_tile)
    if B_pad != B:
        x2d = jnp.pad(x2d, ((0, B_pad - B), (0, 0)))
    grid = (B_pad // TB,)

    # ---- VMEM budget from the actual footprint. ----
    x_bytes = 2 * TB * C * HW * jnp.dtype(x2d.dtype).itemsize      # double-buffered tile
    w_bytes = 2 * (HW * FC * jnp.dtype(matmul_dtype).itemsize + 2 * FC * 4)
    out_bytes = 2 * TB * 4
    vmem_limit = _vmem_limit(x_bytes + w_bytes + out_bytes + (8 << 20))

    smem = pl.BlockSpec(memory_space=pltpu.MemorySpace.SMEM)
    cost = pl.CostEstimate(
        flops=2 * B_pad * (C * HW + HW * FC + FC),
        transcendentals=B_pad,
        bytes_accessed=(B_pad * C * HW * jnp.dtype(x2d.dtype).itemsize
                        + HW * FC * jnp.dtype(matmul_dtype).itemsize
                        + B_pad * 4),
    )

    out = pl.pallas_call(
        _valuenet_kernel,
        out_shape=jax.ShapeDtypeStruct((B_pad, 1), jnp.float32),
        grid=grid,
        in_specs=[
            smem,                                                  # cw (SMEM scalars)
            smem,                                                  # cb
            smem,                                                  # b2
            pl.BlockSpec((TB, C * HW), lambda i: (i, 0)),          # x batch tile (pipelined)
            pl.BlockSpec((HW, FC), lambda i: (0, 0)),              # w1, resident
            pl.BlockSpec((1, FC), lambda i: (0, 0)),               # b1, resident
            pl.BlockSpec((1, FC), lambda i: (0, 0)),               # w2, resident
        ],
        out_specs=pl.BlockSpec((TB, 1), lambda i: (i, 0)),
        compiler_params=pltpu.CompilerParams(
            dimension_semantics=("parallel",),
            vmem_limit_bytes=vmem_limit,
        ),
        cost_estimate=cost,
    )(cw, cb, b2, x2d, w1, b1, w2)

    return out[:B]


def init_params(key, inplanes, outplanes):
    """Deterministic parameter init (PyTorch-style uniform(-1/sqrt(fan_in), ...))."""
    hw = outplanes - 1
    k = jax.random.split(key, 6)

    def unif(k_, shape, fan_in):
        bound = 1.0 / jnp.sqrt(jnp.float32(fan_in))
        return jax.random.uniform(k_, shape, jnp.float32, -bound, bound)

    return {
        "conv_w": unif(k[0], (1, inplanes, 1, 1), inplanes),
        "conv_b": unif(k[1], (1,), inplanes),
        "bn_gamma": jnp.ones((1,), jnp.float32),
        "bn_beta": jnp.zeros((1,), jnp.float32),
        "bn_mean": jnp.zeros((1,), jnp.float32),
        "bn_var": jnp.ones((1,), jnp.float32),
        "fc1_w": unif(k[2], (hw, 256), hw),        # stored as (in, out)
        "fc1_b": unif(k[3], (256,), hw),
        "fc2_w": unif(k[4], (256, 1), 256),
        "fc2_b": unif(k[5], (1,), 256),
    }


def _reference(x_nchw, params):
    """Pure-JAX f32 reference of the same forward pass (eval-mode BN)."""
    B, C, H, W = x_nchw.shape
    eps = 1e-5
    conv = jnp.einsum("bchw,c->bhw", x_nchw, params["conv_w"].reshape(C)) + params["conv_b"][0]
    bn = (conv - params["bn_mean"][0]) / jnp.sqrt(params["bn_var"][0] + eps)
    bn = bn * params["bn_gamma"][0] + params["bn_beta"][0]
    h0 = jnp.maximum(bn, 0.0).reshape(B, H * W)
    h1 = jnp.maximum(
        jnp.dot(h0, params["fc1_w"], precision=jax.lax.Precision.HIGHEST) + params["fc1_b"], 0.0)
    return jnp.tanh(
        jnp.dot(h1, params["fc2_w"], precision=jax.lax.Precision.HIGHEST) + params["fc2_b"])


if __name__ == "__main__":
    # Small shapes consistent with the module: a 16x16 board -> outplanes = 257,
    # so view(-1, outplanes - 1) sees HW = 256 features per sample (lane-aligned).
    B, inplanes, H, W = 2, 4, 16, 16
    outplanes = H * W + 1

    key = jax.random.PRNGKey(0)
    kx, kp = jax.random.split(key)
    x = jax.random.normal(kx, (B, inplanes, H, W), jnp.float32)   # NCHW, like PyTorch
    params = init_params(kp, inplanes, outplanes)
    ref = _reference(x, params)

    # Exact mode (f32 activations + f32 MXU operands): tight check vs f32 reference.
    out_f32 = jax.block_until_ready(value_net_forward(x, params, matmul_dtype=jnp.float32))
    assert out_f32.shape == (B, 1)
    assert jnp.allclose(out_f32, ref, rtol=1e-3, atol=1e-3), (out_f32, ref)

    # Performance-default mode: caller supplies bf16 x (halves HBM traffic on the
    # DMA-bound tile) and fc1 runs with bf16 MXU operands; accumulation stays f32.
    out_bf16 = jax.block_until_ready(value_net_forward(x.astype(jnp.bfloat16), params))
    assert out_bf16.shape == (B, 1)
    assert jnp.allclose(out_bf16, ref, rtol=3e-2, atol=3e-2), (out_bf16, ref)

    print("KERNEL_OK")
</pallas_src>

<mosaic_0001>
module attributes {stable_mosaic.version = 11 : i64} {
  func.func @_valuenet_kernel(%arg0: i32, %arg1: memref<4xf32, #tpu.memory_space<smem>>, %arg2: memref<1xf32, #tpu.memory_space<smem>>, %arg3: memref<1xf32, #tpu.memory_space<smem>>, %arg4: memref<2x1024xf32, #tpu.memory_space<vmem>>, %arg5: memref<256x256xf32, #tpu.memory_space<vmem>>, %arg6: memref<1x256xf32, #tpu.memory_space<vmem>>, %arg7: memref<1x256xf32, #tpu.memory_space<vmem>>, %arg8: memref<2x1xf32, #tpu.memory_space<vmem>>) attributes {dimension_semantics = [#tpu.dimension_semantics<parallel>], iteration_bounds = array<i64: 1>, scalar_prefetch = 0 : i64, scratch_operands = 0 : i64, tpu.core_type = #tpu.core_type<tc>, window_params = [{transform_indices = @transform_0, window_bounds = array<i64: 4>}, {transform_indices = @transform_1, window_bounds = array<i64: 1>}, {transform_indices = @transform_2, window_bounds = array<i64: 1>}, {transform_indices = @transform_3, window_bounds = array<i64: 2, 1024>}, {pipeline_mode = #tpu.pipeline_mode<synchronous>, transform_indices = @transform_4, window_bounds = array<i64: 256, 256>}, {pipeline_mode = #tpu.pipeline_mode<synchronous>, transform_indices = @transform_5, window_bounds = array<i64: 1, 256>}, {pipeline_mode = #tpu.pipeline_mode<synchronous>, transform_indices = @transform_6, window_bounds = array<i64: 1, 256>}, {transform_indices = @transform_7, window_bounds = array<i64: 2, 1>}]} {
    %c0 = arith.constant 0 : index
    %c0_0 = arith.constant 0 : index
    %0 = vector.load %arg4[%c0, %c0_0] : memref<2x1024xf32, #tpu.memory_space<vmem>>, vector<2x256xf32>
    %c0_1 = arith.constant 0 : index
    %1 = memref.load %arg1[%c0_1] : memref<4xf32, #tpu.memory_space<smem>>
    %2 = vector.broadcast %1 : f32 to vector<2x256xf32>
    %3 = arith.mulf %0, %2 : vector<2x256xf32>
    %c0_2 = arith.constant 0 : index
    %c256 = arith.constant 256 : index
    %4 = vector.load %arg4[%c0_2, %c256] : memref<2x1024xf32, #tpu.memory_space<vmem>>, vector<2x256xf32>
    %c1 = arith.constant 1 : index
    %5 = memref.load %arg1[%c1] : memref<4xf32, #tpu.memory_space<smem>>
    %6 = vector.broadcast %5 : f32 to vector<2x256xf32>
    %7 = arith.mulf %4, %6 : vector<2x256xf32>
    %8 = arith.addf %3, %7 : vector<2x256xf32>
    %c0_3 = arith.constant 0 : index
    %c512 = arith.constant 512 : index
    %9 = vector.load %arg4[%c0_3, %c512] : memref<2x1024xf32, #tpu.memory_space<vmem>>, vector<2x256xf32>
    %c2 = arith.constant 2 : index
    %10 = memref.load %arg1[%c2] : memref<4xf32, #tpu.memory_space<smem>>
    %11 = vector.broadcast %10 : f32 to vector<2x256xf32>
    %12 = arith.mulf %9, %11 : vector<2x256xf32>
    %13 = arith.addf %8, %12 : vector<2x256xf32>
    %c0_4 = arith.constant 0 : index
    %c768 = arith.constant 768 : index
    %14 = vector.load %arg4[%c0_4, %c768] : memref<2x1024xf32, #tpu.memory_space<vmem>>, vector<2x256xf32>
    %c3 = arith.constant 3 : index
    %15 = memref.load %arg1[%c3] : memref<4xf32, #tpu.memory_space<smem>>
    %16 = vector.broadcast %15 : f32 to vector<2x256xf32>
    %17 = arith.mulf %14, %16 : vector<2x256xf32>
    %18 = arith.addf %13, %17 : vector<2x256xf32>
    %c0_5 = arith.constant 0 : index
    %19 = memref.load %arg2[%c0_5] : memref<1xf32, #tpu.memory_space<smem>>
    %20 = vector.broadcast %19 : f32 to vector<2x256xf32>
    %21 = arith.addf %18, %20 : vector<2x256xf32>
    %cst = arith.constant 0.000000e+00 : f32
    %22 = vector.broadcast %cst : f32 to vector<2x256xf32>
    %23 = arith.maximumf %21, %22 : vector<2x256xf32>
    %c0_6 = arith.constant 0 : index
    %c0_7 = arith.constant 0 : index
    %24 = vector.load %arg5[%c0_6, %c0_7] : memref<256x256xf32, #tpu.memory_space<vmem>>, vector<256x256xf32>
    %cst_8 = arith.constant dense<0.000000e+00> : vector<2x256xf32>
    %25 = tpu.matmul %23, %24, %cst_8 {dimension_numbers = #tpu.dot_dimension_numbers<[1], [0], [0], [1], [0, 0, 1, 1], [], []>} : vector<2x256xf32>, vector<256x256xf32>, vector<2x256xf32> -> vector<2x256xf32>
    %c0_9 = arith.constant 0 : index
    %c0_10 = arith.constant 0 : index
    %26 = vector.load %arg6[%c0_9, %c0_10] : memref<1x256xf32, #tpu.memory_space<vmem>>, vector<1x256xf32>
    %27 = vector.broadcast %26 : vector<1x256xf32> to vector<2x256xf32>
    %28 = arith.addf %25, %27 : vector<2x256xf32>
    %cst_11 = arith.constant 0.000000e+00 : f32
    %29 = vector.broadcast %cst_11 : f32 to vector<2x256xf32>
    %30 = arith.maximumf %28, %29 : vector<2x256xf32>
    %c0_12 = arith.constant 0 : index
    %c0_13 = arith.constant 0 : index
    %31 = vector.load %arg7[%c0_12, %c0_13] : memref<1x256xf32, #tpu.memory_space<vmem>>, vector<1x256xf32>
    %32 = vector.broadcast %31 : vector<1x256xf32> to vector<2x256xf32>
    %33 = arith.mulf %30, %32 : vector<2x256xf32>
    %cst_14 = arith.constant dense<0.000000e+00> : vector<2xf32>
    %34 = vector.multi_reduction <add>, %33, %cst_14 [1] : vector<2x256xf32> to vector<2xf32>
    %35 = vector.shape_cast %34 : vector<2xf32> to vector<2x1xf32>
    %c0_15 = arith.constant 0 : index
    %36 = memref.load %arg3[%c0_15] : memref<1xf32, #tpu.memory_space<smem>>
    %37 = vector.broadcast %36 : f32 to vector<2x1xf32>
    %38 = arith.addf %35, %37 : vector<2x1xf32>
    %39 = math.tanh %38 : vector<2x1xf32>
    %c0_16 = arith.constant 0 : index
    %c0_17 = arith.constant 0 : index
    %40 = vector.load %arg8[%c0_16, %c0_17] : memref<2x1xf32, #tpu.memory_space<vmem>>, vector<2x1xf32>
    tpu.vector_store %arg8[%c0_16, %c0_17], %39 {strides = array<i32>} : memref<2x1xf32, #tpu.memory_space<vmem>>, vector<2x1xf32>,
    return
  }
  func.func @transform_0(%arg0: i32) -> i32 {
    %c0_i32 = arith.constant 0 : i32
    %c0_i32_0 = arith.constant 0 : i32
    return %c0_i32 : i32
  }
  func.func @transform_1(%arg0: i32) -> i32 {
    %c0_i32 = arith.constant 0 : i32
    %c0_i32_0 = arith.constant 0 : i32
    return %c0_i32 : i32
  }
  func.func @transform_2(%arg0: i32) -> i32 {
    %c0_i32 = arith.constant 0 : i32
    %c0_i32_0 = arith.constant 0 : i32
    return %c0_i32 : i32
  }
  func.func @transform_3(%arg0: i32) -> (i32, i32) {
    %c0_i32 = arith.constant 0 : i32
    %c0_i32_0 = arith.constant 0 : i32
    return %arg0, %c0_i32 : i32, i32
  }
  func.func @transform_4(%arg0: i32) -> (i32, i32) {
    %c0_i32 = arith.constant 0 : i32
    %c0_i32_0 = arith.constant 0 : i32
    %c0_i32_1 = arith.constant 0 : i32
    return %c0_i32, %c0_i32_0 : i32, i32
  }
  func.func @transform_5(%arg0: i32) -> (i32, i32) {
    %c0_i32 = arith.constant 0 : i32
    %c0_i32_0 = arith.constant 0 : i32
    %c0_i32_1 = arith.constant 0 : i32
    return %c0_i32, %c0_i32_0 : i32, i32
  }
  func.func @transform_6(%arg0: i32) -> (i32, i32) {
    %c0_i32 = arith.constant 0 : i32
    %c0_i32_0 = arith.constant 0 : i32
    %c0_i32_1 = arith.constant 0 : i32
    return %c0_i32, %c0_i32_0 : i32, i32
  }
  func.func @transform_7(%arg0: i32) -> (i32, i32) {
    %c0_i32 = arith.constant 0 : i32
    %c0_i32_0 = arith.constant 0 : i32
    return %arg0, %c0_i32 : i32, i32
  }
}

</mosaic_0001>

<llo_original>
// kernel: tpu_custom_call.1
$region0: #{tpu_custom_call.1}
  #allocation0 [shape = 'u32[]', space=smem, size = 0x4, offset = 0x4, fixed_abs, tag = 'smem constant byte address 0x4 - core index']
  #allocation1 [shape = 'u32[72,128]{1,0:T(1,128)}', space=vmem, size = 0x9000, scoped, tag = 'internal scratch']
  #allocation2 [shape = 'f32[1]{0:T(128)S(6)}', space=smem, size = 0x200, scoped, tag = 'scoped memory for tpu_custom_call.1']
  #allocation3 [shape = 'f32[1]{0:T(128)S(6)}', space=smem, size = 0x200, scoped, tag = 'scoped memory for tpu_custom_call.1']
  %s0 = inlined_call_operand.hbm [shape: f32[4], index: 0, kind: input, shape index: {}]
  %s1 = inlined_call_operand.<no memory space> [shape: f32[1], index: 1, kind: input, shape index: {}]
  %s2 = inlined_call_operand.<no memory space> [shape: f32[1], index: 2, kind: input, shape index: {}]
  %s3 = inlined_call_operand.hbm [shape: f32[2,1024], index: 3, kind: input, shape index: {}]
  %s4 = inlined_call_operand.hbm [shape: f32[256,256], index: 4, kind: input, shape index: {}]
  %s5 = inlined_call_operand.vmem [shape: f32[1,256], index: 5, kind: input, shape index: {}]
  %s6 = inlined_call_operand.vmem [shape: f32[1,256], index: 6, kind: input, shape index: {}]
  %s7 = inlined_call_operand.vmem [shape: f32[2,1], index: 7, kind: output, shape index: {}]
  %s8 = sld [smem:[#allocation0]]
  $region50: #{tpu_custom_call.1} parent=0
    _
  %s10 = ssub.s32 1, %s8
  %s11 = scalar_select 0, %s10, %s8
  %12 = sst [smem:[#allocation2]] %s1
  %13 = sst [smem:[#allocation3]] %s2
  $region1: #{tpu_custom_call.1} parent=0
    #allocation4 [shape = 'u8[512]{0}', space=smem, size = 0x200, scoped, tag = 'input window, operand 0, single buffered']
    #allocation5 [shape = 's32[1]{0}', space=sflag, size = 0x4, scoped, tag = 'scoped memory for tpu_custom_call.1']
    #allocation6 [shape = 's32[1]{0}', space=sflag, size = 0x4, scoped, tag = 'scoped memory for tpu_custom_call.1']
    #allocation7 [shape = 'u8[8192]{0}', space=vmem, size = 0x2000, scoped, tag = 'input window, operand 3, single buffered']
    #allocation8 [shape = 'u8[262144]{0}', space=vmem, size = 0x40000, scoped, tag = 'input window, operand 4, single buffered']
    #allocation9 [shape = 's32[1]{0}', space=sflag, size = 0x4, scoped, tag = 'scoped memory for tpu_custom_call.1']
    %14 = vsyncpa [#allocation6], 0
    %15 = vsyncpa [#allocation5], 0
    %16 = vsyncpa [#allocation9], 0
    // Predicated region
    $region2: #{tpu_custom_call.1} parent=1 // pred_check
      _
    $region3: #{tpu_custom_call.1} parent=1 // pred_check_branch
      %18 = sbr.rel (0) target = $region5
    $region4: #{tpu_custom_call.1} parent=1 // pred_region
      %20 = vsyncadd [#allocation6], 0
      %s22 = sshll.u32 %s0, 4
      %s23 = int_to_ptr.hbm [resolvable:$true] %s22
      %25 = dma.hbm_to_smem %s23, 16, [#allocation4], [#allocation6]
    $region5: #{tpu_custom_call.1} parent=1 // pred_fallthru
      _
    // Predicated region
    $region6: #{tpu_custom_call.1} parent=1 // pred_check
      _
    $region7: #{tpu_custom_call.1} parent=1 // pred_check_branch
      %27 = sbr.rel (0) target = $region9
    $region8: #{tpu_custom_call.1} parent=1 // pred_region
      _
    $region9: #{tpu_custom_call.1} parent=1 // pred_fallthru
      _
    // Predicated region
    $region10: #{tpu_custom_call.1} parent=1 // pred_check
      _
    $region11: #{tpu_custom_call.1} parent=1 // pred_check_branch
      %29 = sbr.rel (0) target = $region13
    $region12: #{tpu_custom_call.1} parent=1 // pred_region
      _
    $region13: #{tpu_custom_call.1} parent=1 // pred_fallthru
      _
    // Predicated region
    $region14: #{tpu_custom_call.1} parent=1 // pred_check
      _
    $region15: #{tpu_custom_call.1} parent=1 // pred_check_branch
      %31 = sbr.rel (0) target = $region17
    $region16: #{tpu_custom_call.1} parent=1 // pred_region
      %33 = vsyncadd [#allocation5], 0
      %s35 = sshll.u32 %s3, 4
      %s36 = int_to_ptr.hbm [resolvable:$true] %s35
      %s37 = sshll.u32 [#allocation7], 4
      %s38 = int_to_ptr.vmem [resolvable:$true] %s37
      %40 = dma.hbm_to_vmem [thread:$0]  %s36, 256, %s38, [#allocation5]
    $region17: #{tpu_custom_call.1} parent=1 // pred_fallthru
      _
    // Predicated region
    $region18: #{tpu_custom_call.1} parent=1 // pred_check
      _
    $region19: #{tpu_custom_call.1} parent=1 // pred_check_branch
      %42 = sbr.rel (0) target = $region21
    $region20: #{tpu_custom_call.1} parent=1 // pred_region
      %44 = vsyncadd [#allocation9], 0
      %s45 = sshll.u32 %s4, 4
      %s46 = int_to_ptr.hbm [resolvable:$true] %s45
      %s47 = sshll.u32 [#allocation8], 4
      %s48 = int_to_ptr.vmem [resolvable:$true] %s47
      %53 = dma.hbm_to_vmem [thread:$0]  %s46, 8192, %s48, [#allocation9], 256, 256, 16
    $region21: #{tpu_custom_call.1} parent=1 // pred_fallthru
      _
    // Predicated region
    $region22: #{tpu_custom_call.1} parent=1 // pred_check
      _
    $region23: #{tpu_custom_call.1} parent=1 // pred_check_branch
      %55 = sbr.rel (0) target = $region25
    $region24: #{tpu_custom_call.1} parent=1 // pred_region
      _
    $region25: #{tpu_custom_call.1} parent=1 // pred_fallthru
      _
    // Predicated region
    $region26: #{tpu_custom_call.1} parent=1 // pred_check
      _
    $region27: #{tpu_custom_call.1} parent=1 // pred_check_branch
      %57 = sbr.rel (0) target = $region29
    $region28: #{tpu_custom_call.1} parent=1 // pred_region
      _
    $region29: #{tpu_custom_call.1} parent=1 // pred_fallthru
      _
    // Predicated region
    $region30: #{tpu_custom_call.1} parent=1 // pred_check
      _
    $region31: #{tpu_custom_call.1} parent=1 // pred_check_branch
      %59 = sbr.rel (0) target = $region33
    $region32: #{tpu_custom_call.1} parent=1 // pred_region
      %61 = dma.done [#allocation6], 16
    $region33: #{tpu_custom_call.1} parent=1 // pred_fallthru
      _
    // Predicated region
    $region34: #{tpu_custom_call.1} parent=1 // pred_check
      _
    $region35: #{tpu_custom_call.1} parent=1 // pred_check_branch
      %63 = sbr.rel (0) target = $region37
    $region36: #{tpu_custom_call.1} parent=1 // pred_region
      %65 = dma.done [#allocation5], 256
    $region37: #{tpu_custom_call.1} parent=1 // pred_fallthru
      _
    // Predicated region
    $region38: #{tpu_custom_call.1} parent=1 // pred_check
      _
    $region39: #{tpu_custom_call.1} parent=1 // pred_check_branch
      %67 = sbr.rel (0) target = $region41
    $region40: #{tpu_custom_call.1} parent=1 // pred_region
      %69 = dma.done [#allocation9], 8192
    $region41: #{tpu_custom_call.1} parent=1 // pred_fallthru
      _
    %70 = sfence
    %v71 = vld [vmem:[#allocation7] sm:$0xf]
    %s72 = sld [smem:[#allocation4]]
    %v73 = vstv %s72
    %v74 = vmul.f32 %v71, %v73
    %v75 = vld [vmem:[#allocation7 + $0x4] sm:$0xf]
    %s76 = sld [smem:[#allocation4 + $0x1]]
    %v77 = vstv %s76
    %v78 = vmul.f32 %v75, %v77
    %v79 = vadd.f32 %v74, %v78
    %v80 = vld [vmem:[#allocation7 + $0x8] sm:$0xf]
    %s81 = sld [smem:[#allocation4 + $0x2]]
    %v82 = vstv %s81
    %v83 = vmul.f32 %v80, %v82
    %v84 = vadd.f32 %v79, %v83
    %v85 = vld [vmem:[#allocation7 + $0xc] sm:$0xf]
    %s86 = sld [smem:[#allocation4 + $0x3]]
    %v87 = vstv %s86
    %v88 = vmul.f32 %v85, %v87
    %v89 = vadd.f32 %v84, %v88
    %s90 = sld [smem:[#allocation2]]
    %v91 = vstv %s90
    %v92 = vadd.f32 %v89, %v91
    %v93 = vmax.f32 %v92, 0.0
    %v94 = vld [vmem:[#allocation8] sm:$0xff]
    %v95 = vld [vmem:[#allocation8 + $0x8] sm:$0xff]
    %v96 = vld [vmem:[#allocation8 + $0x10] sm:$0xff]
    %v97 = vld [vmem:[#allocation8 + $0x18] sm:$0xff]
    %v98 = vld [vmem:[#allocation8 + $0x20] sm:$0xff]
    %v99 = vld [vmem:[#allocation8 + $0x28] sm:$0xff]
    %v100 = vld [vmem:[#allocation8 + $0x30] sm:$0xff]
    %v101 = vld [vmem:[#allocation8 + $0x38] sm:$0xff]
    %v102 = vld [vmem:[#allocation8 + $0x40] sm:$0xff]
    %v103 = vld [vmem:[#allocation8 + $0x48] sm:$0xff]
    %v104 = vld [vmem:[#allocation8 + $0x50] sm:$0xff]
    %v105 = vld [vmem:[#allocation8 + $0x58] sm:$0xff]
    %v106 = vld [vmem:[#allocation8 + $0x60] sm:$0xff]
    %v107 = vld [vmem:[#allocation8 + $0x68] sm:$0xff]
    %v108 = vld [vmem:[#allocation8 + $0x70] sm:$0xff]
    %v109 = vld [vmem:[#allocation8 + $0x78] sm:$0xff]
    %v110 = vld [vmem:[#allocation8 + $0x80] sm:$0xff]
    %v111 = vld [vmem:[#allocation8 + $0x88] sm:$0xff]
    %v112 = vld [vmem:[#allocation8 + $0x90] sm:$0xff]
    %v113 = vld [vmem:[#allocation8 + $0x98] sm:$0xff]
    %v114 = vld [vmem:[#allocation8 + $0xa0] sm:$0xff]
    %v115 = vld [vmem:[#allocation8 + $0xa8] sm:$0xff]
    %v116 = vld [vmem:[#allocation8 + $0xb0] sm:$0xff]
    %v117 = vld [vmem:[#allocation8 + $0xb8] sm:$0xff]
    %v118 = vld [vmem:[#allocation8 + $0xc0] sm:$0xff]
    %v119 = vld [vmem:[#allocation8 + $0xc8] sm:$0xff]
    %v120 = vld [vmem:[#allocation8 + $0xd0] sm:$0xff]
    %v121 = vld [vmem:[#allocation8 + $0xd8] sm:$0xff]
    %v122 = vld [vmem:[#allocation8 + $0xe0] sm:$0xff]
    %v123 = vld [vmem:[#allocation8 + $0xe8] sm:$0xff]
    %v124 = vld [vmem:[#allocation8 + $0xf0] sm:$0xff]
    %v125 = vld [vmem:[#allocation8 + $0xf8] sm:$0xff]
    %v126 = vld [vmem:[#allocation8 + $0x100] sm:$0xff]
    %v127 = vld [vmem:[#allocation8 + $0x108] sm:$0xff]
    %v128 = vld [vmem:[#allocation8 + $0x110] sm:$0xff]
    %v129 = vld [vmem:[#allocation8 + $0x118] sm:$0xff]
    %v130 = vld [vmem:[#allocation8 + $0x120] sm:$0xff]
    %v131 = vld [vmem:[#allocation8 + $0x128] sm:$0xff]
    %v132 = vld [vmem:[#allocation8 + $0x130] sm:$0xff]
    %v133 = vld [vmem:[#allocation8 + $0x138] sm:$0xff]
    %v134 = vld [vmem:[#allocation8 + $0x140] sm:$0xff]
    %v135 = vld [vmem:[#allocation8 + $0x148] sm:$0xff]
    %v136 = vld [vmem:[#allocation8 + $0x150] sm:$0xff]
    %v137 = vld [vmem:[#allocation8 + $0x158] sm:$0xff]
    %v138 = vld [vmem:[#allocation8 + $0x160] sm:$0xff]
    %v139 = vld [vmem:[#allocation8 + $0x168] sm:$0xff]
    %v140 = vld [vmem:[#allocation8 + $0x170] sm:$0xff]
    %v141 = vld [vmem:[#allocation8 + $0x178] sm:$0xff]
    %v142 = vld [vmem:[#allocation8 + $0x180] sm:$0xff]
    %v143 = vld [vmem:[#allocation8 + $0x188] sm:$0xff]
    %v144 = vld [vmem:[#allocation8 + $0x190] sm:$0xff]
    %v145 = vld [vmem:[#allocation8 + $0x198] sm:$0xff]
    %v146 = vld [vmem:[#allocation8 + $0x1a0] sm:$0xff]
    %v147 = vld [vmem:[#allocation8 + $0x1a8] sm:$0xff]
    %v148 = vld [vmem:[#allocation8 + $0x1b0] sm:$0xff]
    %v149 = vld [vmem:[#allocation8 + $0x1b8] sm:$0xff]
    %v150 = vld [vmem:[#allocation8 + $0x1c0] sm:$0xff]
    %v151 = vld [vmem:[#allocation8 + $0x1c8] sm:$0xff]
    %v152 = vld [vmem:[#allocation8 + $0x1d0] sm:$0xff]
    %v153 = vld [vmem:[#allocation8 + $0x1d8] sm:$0xff]
    %v154 = vld [vmem:[#allocation8 + $0x1e0] sm:$0xff]
    %v155 = vld [vmem:[#allocation8 + $0x1e8] sm:$0xff]
    %v156 = vld [vmem:[#allocation8 + $0x1f0] sm:$0xff]
    %v157 = vld [vmem:[#allocation8 + $0x1f8] sm:$0xff]
    %v158 = vld [vmem:[%s5] sm:$0x3]
    %v160 = vperm.slane %v158, 0
    %v161 = vperm.slane %v158, 1
    %165 = vst [vmem:[#allocation1] ss:$4 sm:$0xff] %v93
    %v166 = vld.sshfl [vmem:[#allocation1] sm:$0xff pattern:$0x73625140]
    %v167 = vld.sshfl [vmem:[#allocation1 + $0x8] sm:$0xff pattern:$0x73625140]
    %170 = vmatpush.msra.mxu0 %v124
    %171 = vmatpush.msra.mxu0 %v122
    %172 = vmatpush.msra.mxu0 %v120
    %173 = vmatpush.msra.mxu0 %v118
    %174 = vmatpush.msra.mxu0 %v116
    %175 = vmatpush.msra.mxu0 %v114
    %176 = vmatpush.msra.mxu0 %v112
    %177 = vmatpush.msra.mxu0 %v110
    %178 = vmatpush.msra.mxu0 %v108
    %179 = vmatpush.msra.mxu0 %v106
    %180 = vmatpush.msra.mxu0 %v104
    %181 = vmatpush.msra.mxu0 %v102
    %182 = vmatpush.msra.mxu0 %v100
    %183 = vmatpush.msra.mxu0 %v98
    %184 = vmatpush.msra.mxu0 %v96
    %185 = vmatpush.msra.mxu0 %v94
    %186 = vmatmul.f32.gmra.mxu0 %v166
    %v187 = vpop.f32.mrf.mxu0
    %v188 = vadd.f32 %v160, %v187
    %189 = vdwg.mxu0
    %190 = vmatpush.msra.mxu0 %v156
    %191 = vmatpush.msra.mxu0 %v154
    %192 = vmatpush.msra.mxu0 %v152
    %193 = vmatpush.msra.mxu0 %v150
    %194 = vmatpush.msra.mxu0 %v148
    %195 = vmatpush.msra.mxu0 %v146
    %196 = vmatpush.msra.mxu0 %v144
    %197 = vmatpush.msra.mxu0 %v142
    %198 = vmatpush.msra.mxu0 %v140
    %199 = vmatpush.msra.mxu0 %v138
    %200 = vmatpush.msra.mxu0 %v136
    %201 = vmatpush.msra.mxu0 %v134
    %202 = vmatpush.msra.mxu0 %v132
    %203 = vmatpush.msra.mxu0 %v130
    %204 = vmatpush.msra.mxu0 %v128
    %205 = vmatpush.msra.mxu0 %v126
    %206 = vmatmul.f32.gmra.mxu0 %v167
    %v207 = vpop.f32.mrf.mxu0
    %v208 = vadd.f32 %v188, %v207
    %209 = vdwg.mxu0
    %210 = vmatpush.msra.mxu0 %v125
    %211 = vmatpush.msra.mxu0 %v123
    %212 = vmatpush.msra.mxu0 %v121
    %213 = vmatpush.msra.mxu0 %v119
    %214 = vmatpush.msra.mxu0 %v117
    %215 = vmatpush.msra.mxu0 %v115
    %216 = vmatpush.msra.mxu0 %v113
    %217 = vmatpush.msra.mxu0 %v111
    %218 = vmatpush.msra.mxu0 %v109
    %219 = vmatpush.msra.mxu0 %v107
    %220 = vmatpush.msra.mxu0 %v105
    %221 = vmatpush.msra.mxu0 %v103
    %222 = vmatpush.msra.mxu0 %v101
    %223 = vmatpush.msra.mxu0 %v99
    %224 = vmatpush.msra.mxu0 %v97
    %225 = vmatpush.msra.mxu0 %v95
    %226 = vmatmul.f32.gmra.mxu0 %v166
    %v227 = vpop.f32.mrf.mxu0
    %v228 = vadd.f32 %v161, %v227
    %229 = vdwg.mxu0
    %230 = vmatpush.msra.mxu0 %v157
    %231 = vmatpush.msra.mxu0 %v155
    %232 = vmatpush.msra.mxu0 %v153
    %233 = vmatpush.msra.mxu0 %v151
    %234 = vmatpush.msra.mxu0 %v149
    %235 = vmatpush.msra.mxu0 %v147
    %236 = vmatpush.msra.mxu0 %v145
    %237 = vmatpush.msra.mxu0 %v143
    %238 = vmatpush.msra.mxu0 %v141
    %239 = vmatpush.msra.mxu0 %v139
    %240 = vmatpush.msra.mxu0 %v137
    %241 = vmatpush.msra.mxu0 %v135
    %242 = vmatpush.msra.mxu0 %v133
    %243 = vmatpush.msra.mxu0 %v131
    %244 = vmatpush.msra.mxu0 %v129
    %245 = vmatpush.msra.mxu0 %v127
    %246 = vmatmul.f32.gmra.mxu0 %v167
    %v247 = vpop.f32.mrf.mxu0
    %v248 = vadd.f32 %v228, %v247
    %249 = vdwg.mxu0
    %v250 = vmax.f32 %v208, 0.0
    %v251 = vmax.f32 %v248, 0.0
    %v252 = vld [vmem:[%s6] sm:$0x3]
    %v254 = vperm.slane %v252, 0
    %v255 = vperm.slane %v252, 1
    %v258 = vmul.f32 %v250, %v254
    %v259 = vmul.f32 %v251, %v255
    %vm260 = vcmask 1041408
    %v261 = vsel %vm260, %v258, 0.0
    %v262 = vsel %vm260, %v259, 0.0
    %v263 = vadd.f32 %v261, %v262
    %264 = vadd.xlane.f32.xlu0 %v263
    %v265 = vpop.xlane.xlu0 %264
    %s266 = sld [smem:[#allocation3]]
    %v267 = vstv %s266
    %v268 = vadd.f32 %v265, %v267
    %v269 = vtanh.pop %v268
    %vm270 = vcmask 1024
    %271 = vst.msk [vmem:[%s7] sm:$0x3] %vm270, %v269
    // Predicated region
    $region42: #{tpu_custom_call.1} parent=1 // pred_check
      _
    $region43: #{tpu_custom_call.1} parent=1 // pred_check_branch
      %273 = sbr.rel (0) target = $region45
    $region44: #{tpu_custom_call.1} parent=1 // pred_region
      _
    $region45: #{tpu_custom_call.1} parent=1 // pred_fallthru
      _
    // Predicated region
    $region46: #{tpu_custom_call.1} parent=1 // pred_check
      _
    $region47: #{tpu_custom_call.1} parent=1 // pred_check_branch
      %275 = sbr.rel (0) target = $region49
    $region48: #{tpu_custom_call.1} parent=1 // pred_region
      _
    $region49: #{tpu_custom_call.1} parent=1 // pred_fallthru
      _
    %276 = vsyncpa [#allocation5], 1
    %277 = vsyncpa [#allocation9], 1
    %278 = vsyncpa [#allocation6], 1

</llo_original>
